<compile_context>
chip_gen: v5e
topology: v5e:2x2
jax: 0.10.0
libtpu: 0.0.40
codegen_flags: <defaults>
</compile_context>

<pallas_src>
import math

import jax
import jax.numpy as jnp
from jax.experimental import pallas as pl
from jax.experimental.pallas import tpu as pltpu

_LANE = 128
_SUBLANE = 8


def _round_up(n, m):
    return ((n + m - 1) // m) * m


def _qfunction_kernel(x_ref, w1_ref, b1_ref, w2_ref, b2_ref, o_ref):
    # Hidden layer: (TB, S) @ (S, H) -> f32 accumulate on the MXU.
    h = jnp.dot(x_ref[...], w1_ref[...], preferred_element_type=jnp.float32)
    # Bias add + ReLU in f32 on the VPU (biases are kept f32 even in bf16 mode).
    h = jnp.maximum(h + b1_ref[...], 0.0)
    # Output layer: (TB, H) @ (H, A_pad) -> f32 accumulate; cast the hidden
    # activation to the weight dtype (no-op in f32 mode, bf16 in bf16 mode).
    y = jnp.dot(h.astype(w2_ref.dtype), w2_ref[...],
                preferred_element_type=jnp.float32)
    o_ref[...] = (y + b2_ref[...]).astype(o_ref.dtype)


def qfunction_forward(x, w1, b1, w2, b2, *, block_b=1024, use_bf16=False):
    """Pallas forward pass of QFunction.

    Args:
      x:  (B, state_dim) float32
      w1: (state_dim, 48) float32   (already transposed vs. torch layout)
      b1: (1, 48) float32
      w2: (48, action_dim) float32
      b2: (1, action_dim) float32
      block_b: max rows per batch tile (swept 1024-4096 for large batches).
      use_bf16: cast x / W1 / W2 to bf16 for the matmul operands (f32 accum).
    Returns:
      (B, action_dim) float32 Q-values.
    """
    B, S = x.shape
    H = w1.shape[1]
    A = w2.shape[1]

    # --- Lane-dense output: pad action dim to a multiple of 128. -------------
    A_pad = max(_LANE, _round_up(A, _LANE))
    if A_pad != A:
        w2 = jnp.pad(w2, ((0, 0), (0, A_pad - A)))
        b2 = jnp.pad(b2, ((0, 0), (0, A_pad - A)))

    # --- Batch tiling: pick TB, pad B to a multiple of TB. --------------------
    TB = min(block_b, _round_up(B, _SUBLANE))
    TB = _round_up(TB, _SUBLANE)
    B_pad = _round_up(B, TB)
    if B_pad != B:
        x = jnp.pad(x, ((0, B_pad - B), (0, 0)))
    grid_b = B_pad // TB

    # --- Optional bf16 operands (halves HBM bytes for x + resident weights). --
    if use_bf16:
        x = x.astype(jnp.bfloat16)
        w1 = w1.astype(jnp.bfloat16)
        w2 = w2.astype(jnp.bfloat16)
    # Biases stay f32 (bias add / ReLU run in f32 on the VPU).
    b1 = b1.astype(jnp.float32)
    b2 = b2.astype(jnp.float32)

    out_padded = pl.pallas_call(
        _qfunction_kernel,
        out_shape=jax.ShapeDtypeStruct((B_pad, A_pad), jnp.float32),
        grid=(grid_b,),
        in_specs=[
            # x streams over the batch grid.
            pl.BlockSpec((TB, S), lambda i: (i, 0)),
            # Weights/biases: constant index_map -> resident in VMEM.
            pl.BlockSpec((S, H), lambda i: (0, 0)),
            pl.BlockSpec((1, H), lambda i: (0, 0)),
            pl.BlockSpec((H, A_pad), lambda i: (0, 0)),
            pl.BlockSpec((1, A_pad), lambda i: (0, 0)),
        ],
        out_specs=pl.BlockSpec((TB, A_pad), lambda i: (i, 0)),
        compiler_params=pltpu.CompilerParams(
            dimension_semantics=("parallel",),
        ),
    )(x, w1, b1, w2, b2)

    # Slice off batch padding and the lane padding of the action dim.
    return out_padded[:B, :A]


def init_qfunction_params(key, state_dim, action_dim, hidden=48):
    """Deterministic init mirroring the PyTorch module's scheme:
    weights ~ U(-sqrt(6/fan_in), sqrt(6/fan_in)); biases use torch Linear's
    default U(-1/sqrt(fan_in), 1/sqrt(fan_in))."""
    k1, k2, k3, k4 = jax.random.split(key, 4)
    lim1 = math.sqrt(6.0 / state_dim)
    lim2 = math.sqrt(6.0 / hidden)
    w1 = jax.random.uniform(k1, (state_dim, hidden), jnp.float32, -lim1, lim1)
    b1 = jax.random.uniform(
        k2, (1, hidden), jnp.float32,
        -1.0 / math.sqrt(state_dim), 1.0 / math.sqrt(state_dim))
    w2 = jax.random.uniform(k3, (hidden, action_dim), jnp.float32, -lim2, lim2)
    b2 = jax.random.uniform(
        k4, (1, action_dim), jnp.float32,
        -1.0 / math.sqrt(hidden), 1.0 / math.sqrt(hidden))
    return w1, b1, w2, b2


def _reference(x, w1, b1, w2, b2):
    return jnp.maximum(x @ w1 + b1, 0.0) @ w2 + b2


if __name__ == "__main__":
    # Small shapes consistent with the module: batch=8, state_dim=8, action_dim=4.
    batch_size = 8
    state_dim = 8
    action_dim = 4

    key = jax.random.PRNGKey(0)
    k_x, k_x2, k_p = jax.random.split(key, 3)
    x = jax.random.normal(k_x, (batch_size, state_dim), jnp.float32)
    w1, b1, w2, b2 = init_qfunction_params(k_p, state_dim, action_dim)

    # Single-tile path (B=8 -> one grid step).
    out = qfunction_forward(x, w1, b1, w2, b2)
    out = jax.block_until_ready(out)
    ref = _reference(x, w1, b1, w2, b2)
    assert out.shape == (batch_size, action_dim)
    assert jnp.allclose(out, ref, atol=1e-5, rtol=1e-5)

    # Multi-tile path with a ragged batch (exercises grid + tail padding).
    x2 = jax.random.normal(k_x2, (600, state_dim), jnp.float32)
    out2 = qfunction_forward(x2, w1, b1, w2, b2, block_b=256)
    out2 = jax.block_until_ready(out2)
    ref2 = _reference(x2, w1, b1, w2, b2)
    assert out2.shape == (600, action_dim)
    assert jnp.allclose(out2, ref2, atol=1e-5, rtol=1e-5)

    print("KERNEL_OK")
</pallas_src>

<mosaic_0001>
module attributes {stable_mosaic.version = 11 : i64} {
  func.func @_qfunction_kernel(%arg0: i32, %arg1: memref<8x8xf32, #tpu.memory_space<vmem>>, %arg2: memref<8x48xf32, #tpu.memory_space<vmem>>, %arg3: memref<1x48xf32, #tpu.memory_space<vmem>>, %arg4: memref<48x128xf32, #tpu.memory_space<vmem>>, %arg5: memref<1x128xf32, #tpu.memory_space<vmem>>, %arg6: memref<8x128xf32, #tpu.memory_space<vmem>>) attributes {dimension_semantics = [#tpu.dimension_semantics<parallel>], iteration_bounds = array<i64: 1>, scalar_prefetch = 0 : i64, scratch_operands = 0 : i64, tpu.core_type = #tpu.core_type<tc>, window_params = [{transform_indices = @transform_0, window_bounds = array<i64: 8, 8>}, {pipeline_mode = #tpu.pipeline_mode<synchronous>, transform_indices = @transform_1, window_bounds = array<i64: 8, 48>}, {pipeline_mode = #tpu.pipeline_mode<synchronous>, transform_indices = @transform_2, window_bounds = array<i64: 1, 48>}, {pipeline_mode = #tpu.pipeline_mode<synchronous>, transform_indices = @transform_3, window_bounds = array<i64: 48, 128>}, {pipeline_mode = #tpu.pipeline_mode<synchronous>, transform_indices = @transform_4, window_bounds = array<i64: 1, 128>}, {transform_indices = @transform_5, window_bounds = array<i64: 8, 128>}]} {
    %c0 = arith.constant 0 : index
    %c0_0 = arith.constant 0 : index
    %0 = vector.load %arg1[%c0, %c0_0] : memref<8x8xf32, #tpu.memory_space<vmem>>, vector<8x8xf32>
    %c0_1 = arith.constant 0 : index
    %c0_2 = arith.constant 0 : index
    %1 = vector.load %arg2[%c0_1, %c0_2] : memref<8x48xf32, #tpu.memory_space<vmem>>, vector<8x48xf32>
    %cst = arith.constant dense<0.000000e+00> : vector<8x48xf32>
    %2 = tpu.matmul %0, %1, %cst {dimension_numbers = #tpu.dot_dimension_numbers<[1], [0], [0], [1], [0, 0, 1, 1], [], []>} : vector<8x8xf32>, vector<8x48xf32>, vector<8x48xf32> -> vector<8x48xf32>
    %c0_3 = arith.constant 0 : index
    %c0_4 = arith.constant 0 : index
    %3 = vector.load %arg3[%c0_3, %c0_4] : memref<1x48xf32, #tpu.memory_space<vmem>>, vector<1x48xf32>
    %4 = vector.broadcast %3 : vector<1x48xf32> to vector<8x48xf32>
    %5 = arith.addf %2, %4 : vector<8x48xf32>
    %cst_5 = arith.constant 0.000000e+00 : f32
    %6 = vector.broadcast %cst_5 : f32 to vector<8x48xf32>
    %7 = arith.maximumf %5, %6 : vector<8x48xf32>
    %c0_6 = arith.constant 0 : index
    %c0_7 = arith.constant 0 : index
    %8 = vector.load %arg4[%c0_6, %c0_7] : memref<48x128xf32, #tpu.memory_space<vmem>>, vector<48x128xf32>
    %cst_8 = arith.constant dense<0.000000e+00> : vector<8x128xf32>
    %9 = tpu.matmul %7, %8, %cst_8 {dimension_numbers = #tpu.dot_dimension_numbers<[1], [0], [0], [1], [0, 0, 1, 1], [], []>} : vector<8x48xf32>, vector<48x128xf32>, vector<8x128xf32> -> vector<8x128xf32>
    %c0_9 = arith.constant 0 : index
    %c0_10 = arith.constant 0 : index
    %10 = vector.load %arg5[%c0_9, %c0_10] : memref<1x128xf32, #tpu.memory_space<vmem>>, vector<1x128xf32>
    %11 = vector.broadcast %10 : vector<1x128xf32> to vector<8x128xf32>
    %12 = arith.addf %9, %11 : vector<8x128xf32>
    %c0_11 = arith.constant 0 : index
    %c0_12 = arith.constant 0 : index
    %13 = vector.load %arg6[%c0_11, %c0_12] : memref<8x128xf32, #tpu.memory_space<vmem>>, vector<8x128xf32>
    tpu.vector_store %arg6[%c0_11, %c0_12], %12 {strides = array<i32>} : memref<8x128xf32, #tpu.memory_space<vmem>>, vector<8x128xf32>,
    return
  }
  func.func @transform_0(%arg0: i32) -> (i32, i32) {
    %c0_i32 = arith.constant 0 : i32
    %c0_i32_0 = arith.constant 0 : i32
    return %arg0, %c0_i32 : i32, i32
  }
  func.func @transform_1(%arg0: i32) -> (i32, i32) {
    %c0_i32 = arith.constant 0 : i32
    %c0_i32_0 = arith.constant 0 : i32
    %c0_i32_1 = arith.constant 0 : i32
    return %c0_i32, %c0_i32_0 : i32, i32
  }
  func.func @transform_2(%arg0: i32) -> (i32, i32) {
    %c0_i32 = arith.constant 0 : i32
    %c0_i32_0 = arith.constant 0 : i32
    %c0_i32_1 = arith.constant 0 : i32
    return %c0_i32, %c0_i32_0 : i32, i32
  }
  func.func @transform_3(%arg0: i32) -> (i32, i32) {
    %c0_i32 = arith.constant 0 : i32
    %c0_i32_0 = arith.constant 0 : i32
    %c0_i32_1 = arith.constant 0 : i32
    return %c0_i32, %c0_i32_0 : i32, i32
  }
  func.func @transform_4(%arg0: i32) -> (i32, i32) {
    %c0_i32 = arith.constant 0 : i32
    %c0_i32_0 = arith.constant 0 : i32
    %c0_i32_1 = arith.constant 0 : i32
    return %c0_i32, %c0_i32_0 : i32, i32
  }
  func.func @transform_5(%arg0: i32) -> (i32, i32) {
    %c0_i32 = arith.constant 0 : i32
    %c0_i32_0 = arith.constant 0 : i32
    return %arg0, %c0_i32 : i32, i32
  }
}

</mosaic_0001>

<llo_original>
// kernel: tpu_custom_call.1
$region0: #{tpu_custom_call.1}
  #allocation0 [shape = 'u32[]', space=smem, size = 0x4, offset = 0x4, fixed_abs, tag = 'smem constant byte address 0x4 - core index']
  #allocation1 [shape = 'u32[72,128]{1,0:T(1,128)}', space=vmem, size = 0x9000, scoped, tag = 'internal scratch']
  %s0 = inlined_call_operand.hbm [shape: f32[8,8], index: 0, kind: input, shape index: {}]
  %s1 = inlined_call_operand.hbm [shape: f32[8,48], index: 1, kind: input, shape index: {}]
  %s2 = inlined_call_operand.vmem [shape: f32[1,48], index: 2, kind: input, shape index: {}]
  %s3 = inlined_call_operand.hbm [shape: f32[48,128], index: 3, kind: input, shape index: {}]
  %s4 = inlined_call_operand.vmem [shape: f32[1,128], index: 4, kind: input, shape index: {}]
  %s5 = inlined_call_operand.hbm [shape: f32[8,128], index: 5, kind: output, shape index: {}]
  %s6 = sld [smem:[#allocation0]]
  $region42: #{tpu_custom_call.1} parent=0
    _
  %s8 = ssub.s32 1, %s6
  %s9 = scalar_select 0, %s8, %s6
  $region1: #{tpu_custom_call.1} parent=0
    #allocation2 [shape = 'u8[4096]{0}', space=vmem, size = 0x1000, scoped, tag = 'input window, operand 0, single buffered']
    #allocation3 [shape = 's32[1]{0}', space=sflag, size = 0x4, scoped, tag = 'scoped memory for tpu_custom_call.1']
    #allocation4 [shape = 's32[1]{0}', space=sflag, size = 0x4, scoped, tag = 'scoped memory for tpu_custom_call.1']
    #allocation5 [shape = 'u8[4096]{0}', space=vmem, size = 0x1000, scoped, tag = 'input window, operand 1, single buffered']
    #allocation6 [shape = 's32[1]{0}', space=sflag, size = 0x4, scoped, tag = 'scoped memory for tpu_custom_call.1']
    #allocation7 [shape = 'u8[24576]{0}', space=vmem, size = 0x6000, scoped, tag = 'input window, operand 3, single buffered']
    #allocation8 [shape = 'u8[4096]{0}', space=vmem, size = 0x1000, scoped, tag = 'output window, operand 0, single buffered']
    %10 = vsyncpa [#allocation3], 0
    %11 = vsyncpa [#allocation6], 0
    %12 = vsyncpa [#allocation4], 0
    // Predicated region
    $region2: #{tpu_custom_call.1} parent=1 // pred_check
      _
    $region3: #{tpu_custom_call.1} parent=1 // pred_check_branch
      %14 = sbr.rel (0) target = $region5
    $region4: #{tpu_custom_call.1} parent=1 // pred_region
      %16 = vsyncadd [#allocation3], 0
      %s18 = sshll.u32 %s0, 4
      %s19 = int_to_ptr.hbm [resolvable:$true] %s18
      %s20 = sshll.u32 [#allocation2], 4
      %s21 = int_to_ptr.vmem [resolvable:$true] %s20
      %23 = dma.hbm_to_vmem [thread:$0]  %s19, 128, %s21, [#allocation3]
    $region5: #{tpu_custom_call.1} parent=1 // pred_fallthru
      _
    // Predicated region
    $region6: #{tpu_custom_call.1} parent=1 // pred_check
      _
    $region7: #{tpu_custom_call.1} parent=1 // pred_check_branch
      %25 = sbr.rel (0) target = $region9
    $region8: #{tpu_custom_call.1} parent=1 // pred_region
      %27 = vsyncadd [#allocation6], 0
      %s29 = sshll.u32 %s1, 4
      %s30 = int_to_ptr.hbm [resolvable:$true] %s29
      %s31 = sshll.u32 [#allocation5], 4
      %s32 = int_to_ptr.vmem [resolvable:$true] %s31
      %34 = dma.hbm_to_vmem [thread:$0]  %s30, 128, %s32, [#allocation6]
    $region9: #{tpu_custom_call.1} parent=1 // pred_fallthru
      _
    // Predicated region
    $region10: #{tpu_custom_call.1} parent=1 // pred_check
      _
    $region11: #{tpu_custom_call.1} parent=1 // pred_check_branch
      %36 = sbr.rel (0) target = $region13
    $region12: #{tpu_custom_call.1} parent=1 // pred_region
      _
    $region13: #{tpu_custom_call.1} parent=1 // pred_fallthru
      _
    // Predicated region
    $region14: #{tpu_custom_call.1} parent=1 // pred_check
      _
    $region15: #{tpu_custom_call.1} parent=1 // pred_check_branch
      %38 = sbr.rel (0) target = $region17
    $region16: #{tpu_custom_call.1} parent=1 // pred_region
      %40 = vsyncadd [#allocation6], 0
      %s41 = sshll.u32 %s3, 4
      %s42 = int_to_ptr.hbm [resolvable:$true] %s41
      %s43 = sshll.u32 [#allocation7], 4
      %s44 = int_to_ptr.vmem [resolvable:$true] %s43
      %49 = dma.hbm_to_vmem [thread:$0]  %s42, 768, %s44, [#allocation6], 128, 128, 8
    $region17: #{tpu_custom_call.1} parent=1 // pred_fallthru
      _
    // Predicated region
    $region18: #{tpu_custom_call.1} parent=1 // pred_check
      _
    $region19: #{tpu_custom_call.1} parent=1 // pred_check_branch
      %51 = sbr.rel (0) target = $region21
    $region20: #{tpu_custom_call.1} parent=1 // pred_region
      _
    $region21: #{tpu_custom_call.1} parent=1 // pred_fallthru
      _
    // Predicated region
    $region22: #{tpu_custom_call.1} parent=1 // pred_check
      _
    $region23: #{tpu_custom_call.1} parent=1 // pred_check_branch
      %53 = sbr.rel (0) target = $region25
    $region24: #{tpu_custom_call.1} parent=1 // pred_region
      %55 = dma.done [#allocation3], 128
    $region25: #{tpu_custom_call.1} parent=1 // pred_fallthru
      _
    // Predicated region
    $region26: #{tpu_custom_call.1} parent=1 // pred_check
      _
    $region27: #{tpu_custom_call.1} parent=1 // pred_check_branch
      %57 = sbr.rel (0) target = $region29
    $region28: #{tpu_custom_call.1} parent=1 // pred_region
      %59 = dma.done [#allocation6], 128
    $region29: #{tpu_custom_call.1} parent=1 // pred_fallthru
      _
    // Predicated region
    $region30: #{tpu_custom_call.1} parent=1 // pred_check
      _
    $region31: #{tpu_custom_call.1} parent=1 // pred_check_branch
      %61 = sbr.rel (0) target = $region33
    $region32: #{tpu_custom_call.1} parent=1 // pred_region
      %63 = dma.done [#allocation6], 768
    $region33: #{tpu_custom_call.1} parent=1 // pred_fallthru
      _
    %v64 = vld [vmem:[#allocation2] sm:$0xff]
    %v65 = vld [vmem:[#allocation5] sm:$0xff]
    %v66 = vld [vmem:[%s2] sm:$0x1]
    %v68 = vperm.slane %v66, 0
    %vm70 = vcmask 64512
    %v72 = vsel %vm70, %v64, 0
    %74 = vmatpush.msra.mxu0 0.0
    %75 = vmatpush.msra.mxu0 0.0
    %76 = vmatpush.msra.mxu0 0.0
    %77 = vmatpush.msra.mxu0 0.0
    %78 = vmatpush.msra.mxu0 0.0
    %79 = vmatpush.msra.mxu0 0.0
    %80 = vmatpush.msra.mxu0 0.0
    %81 = vmatpush.msra.mxu0 0.0
    %82 = vmatpush.msra.mxu0 0.0
    %83 = vmatpush.msra.mxu0 0.0
    %84 = vmatpush.msra.mxu0 0.0
    %85 = vmatpush.msra.mxu0 0.0
    %86 = vmatpush.msra.mxu0 0.0
    %87 = vmatpush.msra.mxu0 0.0
    %88 = vmatpush.msra.mxu0 0.0
    %89 = vmatpush.msra.mxu0 %v65
    %90 = vmatmul.f32.gmra.mxu0 %v72
    %v91 = vpop.f32.mrf.mxu0
    %v92 = vadd.f32 %v68, %v91
    %93 = vdwg.mxu0
    %v94 = vmax.f32 %v92, 0.0
    %v95 = vld [vmem:[#allocation7] sm:$0xff]
    %v96 = vld [vmem:[#allocation7 + $0x8] sm:$0xff]
    %v97 = vld [vmem:[#allocation7 + $0x10] sm:$0xff]
    %v98 = vld [vmem:[#allocation7 + $0x18] sm:$0xff]
    %v99 = vld [vmem:[#allocation7 + $0x20] sm:$0xff]
    %v100 = vld [vmem:[#allocation7 + $0x28] sm:$0xff]
    %v101 = vld [vmem:[%s4] sm:$0x1]
    %v103 = vperm.slane %v101, 0
    %vm105 = vcmask 392192
    %v107 = vsel %vm105, %v94, 0
    %109 = vmatpush.msra.mxu0 0.0
    %110 = vmatpush.msra.mxu0 0.0
    %111 = vmatpush.msra.mxu0 0.0
    %112 = vmatpush.msra.mxu0 0.0
    %113 = vmatpush.msra.mxu0 0.0
    %114 = vmatpush.msra.mxu0 0.0
    %115 = vmatpush.msra.mxu0 0.0
    %116 = vmatpush.msra.mxu0 0.0
    %117 = vmatpush.msra.mxu0 0.0
    %118 = vmatpush.msra.mxu0 0.0
    %119 = vmatpush.msra.mxu0 %v100
    %120 = vmatpush.msra.mxu0 %v99
    %121 = vmatpush.msra.mxu0 %v98
    %122 = vmatpush.msra.mxu0 %v97
    %123 = vmatpush.msra.mxu0 %v96
    %124 = vmatpush.msra.mxu0 %v95
    %125 = vmatmul.f32.gmra.mxu0 %v107
    %v126 = vpop.f32.mrf.mxu0
    %v127 = vadd.f32 %v103, %v126
    %128 = vdwg.mxu0
    %129 = vst [vmem:[#allocation8] sm:$0xff] %v127
    // Predicated region
    $region34: #{tpu_custom_call.1} parent=1 // pred_check
      _
    $region35: #{tpu_custom_call.1} parent=1 // pred_check_branch
      %131 = sbr.rel (0) target = $region37
    $region36: #{tpu_custom_call.1} parent=1 // pred_region
      %133 = vsyncadd [#allocation4], 0
      %s135 = sshll.u32 [#allocation8], 4
      %s136 = int_to_ptr.vmem [resolvable:$true] %s135
      %s137 = sshll.u32 %s5, 4
      %s138 = int_to_ptr.hbm [resolvable:$true] %s137
      %140 = dma.vmem_to_hbm [thread:$0]  %s136, 128, %s138, [#allocation4]
    $region37: #{tpu_custom_call.1} parent=1 // pred_fallthru
      _
    // Predicated region
    $region38: #{tpu_custom_call.1} parent=1 // pred_check
      _
    $region39: #{tpu_custom_call.1} parent=1 // pred_check_branch
      %142 = sbr.rel (0) target = $region41
    $region40: #{tpu_custom_call.1} parent=1 // pred_region
      %144 = dma.done [#allocation4], 128
    $region41: #{tpu_custom_call.1} parent=1 // pred_fallthru
      _
    %145 = vsyncpa [#allocation3], 1
    %146 = vsyncpa [#allocation6], 1
    %147 = vsyncpa [#allocation4], 1

</llo_original>
